<compile_context>
chip_gen: v5e
topology: v5e:2x2
jax: 0.10.0
libtpu: 0.0.40
codegen_flags: <defaults>
</compile_context>

<pallas_src>
import jax
import jax.numpy as jnp
import numpy as np
from jax.experimental import pallas as pl
from jax.experimental.pallas import tpu as pltpu


def _round_up(x, m):
    return ((x + m - 1) // m) * m


def _largest_divisor_leq(n, cap):
    best = 1
    for d in range(1, min(n, cap) + 1):
        if n % d == 0:
            best = d
    return best


def _graph_attn_bias_kernel(ab_ref, sp_ref, emb_ref, out_ref):
    """One (batch-block, M-tile) per grid step.

    ab_ref  : [Bblk, 1, Mblk]  f32  attn_bias, flattened pair axis, 128-padded
    sp_ref  : [Bblk, 1, Mblk]  i32  0 = border (graph-token row/col), s+1 = spatial_pos s
    emb_ref : [S+1, H, 1]      f32  row 0 = virtual-distance t, rows 1.. = spatial encoder
    out_ref : [Bblk, H, Mblk]
    """
    sp = sp_ref[...]                       # [Bblk, 1, Mblk] i32
    emb = emb_ref[...]                     # [S+1, H, 1]     f32
    s1 = emb.shape[0]

    # Tiny table (S+1 rows): unrolled select-accumulate on the VPU.  Avoids any
    # [S, Mblk] one-hot buffer / underutilized MXU push-pop.  The compare runs on
    # the narrow [Bblk, 1, Mblk] index tensor; only select + add are full-tile.
    # Row 0 (the graph-token border -> virtual distance t) is folded into the
    # accumulator init.
    bias = jnp.where(sp == 0, emb[0], 0.0)                  # [Bblk, H, Mblk]
    for s in range(1, s1):
        bias = bias + jnp.where(sp == s, emb[s], 0.0)

    # attn_bias is added twice in the PyTorch forward (clone+repeat, then + at end).
    out_ref[...] = (2.0 * ab_ref[...] + bias).astype(out_ref.dtype)


def graph_attn_bias(attn_bias, spatial_pos, spatial_emb, virtual_t,
                    *, m_block_max=4096, b_block_max=8, out_dtype=jnp.float32):
    """attn_bias [B, N+1, N+1] f32, spatial_pos [B, N, N] int,
    spatial_emb [S, H] f32, virtual_t [1, H] f32  ->  [B, H, N+1, N+1]."""
    B, N1, _ = attn_bias.shape
    S, H = spatial_emb.shape
    M = N1 * N1

    # ---- glue / index prep (plain JAX, batch-invariant math hoisted here) ------
    # Clamp indices like a jnp gather would (PyTorch Embedding would error on OOB).
    sp = jnp.clip(spatial_pos.astype(jnp.int32), 0, S - 1)
    # Encode which extended-table row each (i, j) pair reads:
    #   border (i == 0 or j == 0)  -> 0            (virtual-distance t)
    #   interior (i >= 1, j >= 1)  -> spatial + 1  (spatial_pos_encoder row)
    sp_enc = jnp.pad(sp + 1, ((0, 0), (1, 0), (1, 0)))          # [B, N1, N1]
    emb_ext = jnp.concatenate(
        [virtual_t.reshape(1, H).astype(jnp.float32),
         spatial_emb.astype(jnp.float32)], axis=0)              # [S+1, H]
    emb3 = emb_ext.reshape(S + 1, H, 1)

    # ---- lane-dense padding + tiling of the flattened pair axis ---------------
    m_pad128 = _round_up(M, 128)
    Mblk = min(m_pad128, m_block_max)
    M_pad = _round_up(M, Mblk)
    pad = M_pad - M
    ab_flat = jnp.pad(attn_bias.astype(jnp.float32).reshape(B, M), ((0, 0), (0, pad)))
    sp_flat = jnp.pad(sp_enc.reshape(B, M), ((0, 0), (0, pad)))
    ab_flat = ab_flat.reshape(B, 1, M_pad)
    sp_flat = sp_flat.reshape(B, 1, M_pad)

    m_blocks = M_pad // Mblk
    Bblk = _largest_divisor_leq(B, b_block_max)
    # Keep >= 2 parallel grid units when the problem allows, so v7x's second
    # TensorCore has work even at tiny sizes (no-op on single-TC v5e/v6e).
    if B // Bblk == 1 and m_blocks == 1 and B >= 2:
        Bblk = _largest_divisor_leq(B, max(1, B // 2))
    b_blocks = B // Bblk

    out_pad = pl.pallas_call(
        _graph_attn_bias_kernel,
        out_shape=jax.ShapeDtypeStruct((B, H, M_pad), out_dtype),
        grid=(b_blocks, m_blocks),
        in_specs=[
            pl.BlockSpec((Bblk, 1, Mblk), lambda b, m: (b, 0, m)),
            pl.BlockSpec((Bblk, 1, Mblk), lambda b, m: (b, 0, m)),
            pl.BlockSpec((S + 1, H, 1), lambda b, m: (0, 0, 0)),
        ],
        out_specs=pl.BlockSpec((Bblk, H, Mblk), lambda b, m: (b, 0, m)),
        compiler_params=pltpu.CompilerParams(
            dimension_semantics=("parallel", "parallel")),
    )(ab_flat, sp_flat, emb3)

    # Slice off the lane padding (padded lanes hold garbage and are never exposed).
    return out_pad[:, :, :M].reshape(B, H, N1, N1)


def graph_attn_bias_ref(attn_bias, spatial_pos, spatial_emb, virtual_t):
    """Pure-JAX reference mirroring the PyTorch forward."""
    B, N1, _ = attn_bias.shape
    H = spatial_emb.shape[1]
    g = jnp.broadcast_to(attn_bias[:, None], (B, H, N1, N1))
    sp_bias = spatial_emb[spatial_pos]                 # [B, N, N, H]
    sp_bias = jnp.transpose(sp_bias, (0, 3, 1, 2))     # [B, H, N, N]
    g = g.at[:, :, 1:, 1:].add(sp_bias)
    t = virtual_t.reshape(1, H, 1)
    g = g.at[:, :, 1:, 0].add(t)
    g = g.at[:, :, 0, :].add(t)
    g = g + attn_bias[:, None]
    return g


def _run_case(key, *, B, N, num_spatial, num_heads, **kw):
    N1 = N + 1
    k_ab, k_sp, k_emb, k_t = jax.random.split(key, 4)
    spatial_emb = 0.02 * jax.random.normal(k_emb, (num_spatial, num_heads), jnp.float32)
    virtual_t = 0.02 * jax.random.normal(k_t, (1, num_heads), jnp.float32)
    attn_bias = jax.random.normal(k_ab, (B, N1, N1), jnp.float32)
    spatial_pos = jax.random.randint(k_sp, (B, N, N), 0, num_spatial, jnp.int32)

    out = graph_attn_bias(attn_bias, spatial_pos, spatial_emb, virtual_t, **kw)
    out = jax.block_until_ready(out)
    ref = graph_attn_bias_ref(attn_bias, spatial_pos, spatial_emb, virtual_t)
    np.testing.assert_allclose(np.asarray(out), np.asarray(ref), rtol=1e-5, atol=1e-5)
    assert out.shape == (B, num_heads, N1, N1) and out.dtype == jnp.float32
    return out


if __name__ == "__main__":
    # Module hyper-params (small, consistent with __init__).
    num_heads = 8
    num_atoms = 32
    num_edges = 16
    num_spatial = 16
    num_edge_dis = 4
    hidden_dim = 32
    n_layers = 2

    key = jax.random.PRNGKey(0)
    k0, k1, k_x, k_edge = jax.random.split(key, 4)

    # edge_encoder / edge_dis_encoder are created in __init__ but unused by this forward.
    edge_encoder_w = 0.02 * jax.random.normal(k_edge, (num_edges + 1, num_heads), jnp.float32)  # unused
    x = jax.random.randint(k_x, (2, 8), 0, num_atoms, jnp.int32)  # unpacked but unused in forward

    # Case 1: primary small case (B=2, N=8 -> single M tile, batch-split grid).
    _run_case(k0, B=2, N=8, num_spatial=num_spatial, num_heads=num_heads)

    # Case 2: exercises the multi-tile / padded-M path (M = 144 -> two 128-lane tiles).
    _run_case(k1, B=2, N=11, num_spatial=num_spatial, num_heads=num_heads,
              m_block_max=128)

    print("KERNEL_OK")
</pallas_src>

<mosaic_0001>
module attributes {stable_mosaic.version = 11 : i64} {
  func.func @_graph_attn_bias_kernel(%arg0: i32, %arg1: i32, %arg2: memref<1x1x128xf32, #tpu.memory_space<vmem>>, %arg3: memref<1x1x128xi32, #tpu.memory_space<vmem>>, %arg4: memref<17x8x1xf32, #tpu.memory_space<vmem>>, %arg5: memref<1x8x128xf32, #tpu.memory_space<vmem>>) attributes {dimension_semantics = [#tpu.dimension_semantics<parallel>, #tpu.dimension_semantics<parallel>], iteration_bounds = array<i64: 2, 1>, scalar_prefetch = 0 : i64, scratch_operands = 0 : i64, tpu.core_type = #tpu.core_type<tc>, window_params = [{transform_indices = @transform_0, window_bounds = array<i64: 1, 1, 128>}, {transform_indices = @transform_1, window_bounds = array<i64: 1, 1, 128>}, {pipeline_mode = #tpu.pipeline_mode<synchronous>, transform_indices = @transform_2, window_bounds = array<i64: 17, 8, 1>}, {transform_indices = @transform_3, window_bounds = array<i64: 1, 8, 128>}]} {
    %c0 = arith.constant 0 : index
    %c0_0 = arith.constant 0 : index
    %c0_1 = arith.constant 0 : index
    %0 = vector.load %arg3[%c0, %c0_0, %c0_1] : memref<1x1x128xi32, #tpu.memory_space<vmem>>, vector<1x1x128xi32>
    %c0_2 = arith.constant 0 : index
    %c0_3 = arith.constant 0 : index
    %c0_4 = arith.constant 0 : index
    %1 = vector.load %arg4[%c0_2, %c0_3, %c0_4] : memref<17x8x1xf32, #tpu.memory_space<vmem>>, vector<17x8x1xf32>
    %c0_i32 = arith.constant 0 : i32
    %2 = vector.broadcast %c0_i32 : i32 to vector<1x1x128xi32>
    %3 = arith.cmpi eq, %0, %2 : vector<1x1x128xi32>
    %4 = vector.extract_strided_slice %1 {offsets = [0, 0, 0], sizes = [1, 8, 1], strides = [1, 1, 1]} : vector<17x8x1xf32> to vector<1x8x1xf32>
    %5 = vector.shape_cast %4 : vector<1x8x1xf32> to vector<8x1xf32>
    %cst = arith.constant 0.000000e+00 : f32
    %6 = vector.shape_cast %3 : vector<1x1x128xi1> to vector<1x1x128xi1>
    %7 = vector.broadcast %6 : vector<1x1x128xi1> to vector<1x8x128xi1>
    %8 = vector.shape_cast %5 : vector<8x1xf32> to vector<1x8x1xf32>
    %9 = vector.broadcast %8 : vector<1x8x1xf32> to vector<1x8x128xf32>
    %10 = vector.broadcast %cst : f32 to vector<1x8x128xf32>
    %11 = arith.select %7, %9, %10 : vector<1x8x128xi1>, vector<1x8x128xf32>
    %c1_i32 = arith.constant 1 : i32
    %12 = vector.broadcast %c1_i32 : i32 to vector<1x1x128xi32>
    %13 = arith.cmpi eq, %0, %12 : vector<1x1x128xi32>
    %14 = vector.extract_strided_slice %1 {offsets = [1, 0, 0], sizes = [1, 8, 1], strides = [1, 1, 1]} : vector<17x8x1xf32> to vector<1x8x1xf32>
    %15 = vector.shape_cast %14 : vector<1x8x1xf32> to vector<8x1xf32>
    %cst_5 = arith.constant 0.000000e+00 : f32
    %16 = vector.shape_cast %13 : vector<1x1x128xi1> to vector<1x1x128xi1>
    %17 = vector.broadcast %16 : vector<1x1x128xi1> to vector<1x8x128xi1>
    %18 = vector.shape_cast %15 : vector<8x1xf32> to vector<1x8x1xf32>
    %19 = vector.broadcast %18 : vector<1x8x1xf32> to vector<1x8x128xf32>
    %20 = vector.broadcast %cst_5 : f32 to vector<1x8x128xf32>
    %21 = arith.select %17, %19, %20 : vector<1x8x128xi1>, vector<1x8x128xf32>
    %22 = arith.addf %11, %21 : vector<1x8x128xf32>
    %c2_i32 = arith.constant 2 : i32
    %23 = vector.broadcast %c2_i32 : i32 to vector<1x1x128xi32>
    %24 = arith.cmpi eq, %0, %23 : vector<1x1x128xi32>
    %25 = vector.extract_strided_slice %1 {offsets = [2, 0, 0], sizes = [1, 8, 1], strides = [1, 1, 1]} : vector<17x8x1xf32> to vector<1x8x1xf32>
    %26 = vector.shape_cast %25 : vector<1x8x1xf32> to vector<8x1xf32>
    %cst_6 = arith.constant 0.000000e+00 : f32
    %27 = vector.shape_cast %24 : vector<1x1x128xi1> to vector<1x1x128xi1>
    %28 = vector.broadcast %27 : vector<1x1x128xi1> to vector<1x8x128xi1>
    %29 = vector.shape_cast %26 : vector<8x1xf32> to vector<1x8x1xf32>
    %30 = vector.broadcast %29 : vector<1x8x1xf32> to vector<1x8x128xf32>
    %31 = vector.broadcast %cst_6 : f32 to vector<1x8x128xf32>
    %32 = arith.select %28, %30, %31 : vector<1x8x128xi1>, vector<1x8x128xf32>
    %33 = arith.addf %22, %32 : vector<1x8x128xf32>
    %c3_i32 = arith.constant 3 : i32
    %34 = vector.broadcast %c3_i32 : i32 to vector<1x1x128xi32>
    %35 = arith.cmpi eq, %0, %34 : vector<1x1x128xi32>
    %36 = vector.extract_strided_slice %1 {offsets = [3, 0, 0], sizes = [1, 8, 1], strides = [1, 1, 1]} : vector<17x8x1xf32> to vector<1x8x1xf32>
    %37 = vector.shape_cast %36 : vector<1x8x1xf32> to vector<8x1xf32>
    %cst_7 = arith.constant 0.000000e+00 : f32
    %38 = vector.shape_cast %35 : vector<1x1x128xi1> to vector<1x1x128xi1>
    %39 = vector.broadcast %38 : vector<1x1x128xi1> to vector<1x8x128xi1>
    %40 = vector.shape_cast %37 : vector<8x1xf32> to vector<1x8x1xf32>
    %41 = vector.broadcast %40 : vector<1x8x1xf32> to vector<1x8x128xf32>
    %42 = vector.broadcast %cst_7 : f32 to vector<1x8x128xf32>
    %43 = arith.select %39, %41, %42 : vector<1x8x128xi1>, vector<1x8x128xf32>
    %44 = arith.addf %33, %43 : vector<1x8x128xf32>
    %c4_i32 = arith.constant 4 : i32
    %45 = vector.broadcast %c4_i32 : i32 to vector<1x1x128xi32>
    %46 = arith.cmpi eq, %0, %45 : vector<1x1x128xi32>
    %47 = vector.extract_strided_slice %1 {offsets = [4, 0, 0], sizes = [1, 8, 1], strides = [1, 1, 1]} : vector<17x8x1xf32> to vector<1x8x1xf32>
    %48 = vector.shape_cast %47 : vector<1x8x1xf32> to vector<8x1xf32>
    %cst_8 = arith.constant 0.000000e+00 : f32
    %49 = vector.shape_cast %46 : vector<1x1x128xi1> to vector<1x1x128xi1>
    %50 = vector.broadcast %49 : vector<1x1x128xi1> to vector<1x8x128xi1>
    %51 = vector.shape_cast %48 : vector<8x1xf32> to vector<1x8x1xf32>
    %52 = vector.broadcast %51 : vector<1x8x1xf32> to vector<1x8x128xf32>
    %53 = vector.broadcast %cst_8 : f32 to vector<1x8x128xf32>
    %54 = arith.select %50, %52, %53 : vector<1x8x128xi1>, vector<1x8x128xf32>
    %55 = arith.addf %44, %54 : vector<1x8x128xf32>
    %c5_i32 = arith.constant 5 : i32
    %56 = vector.broadcast %c5_i32 : i32 to vector<1x1x128xi32>
    %57 = arith.cmpi eq, %0, %56 : vector<1x1x128xi32>
    %58 = vector.extract_strided_slice %1 {offsets = [5, 0, 0], sizes = [1, 8, 1], strides = [1, 1, 1]} : vector<17x8x1xf32> to vector<1x8x1xf32>
    %59 = vector.shape_cast %58 : vector<1x8x1xf32> to vector<8x1xf32>
    %cst_9 = arith.constant 0.000000e+00 : f32
    %60 = vector.shape_cast %57 : vector<1x1x128xi1> to vector<1x1x128xi1>
    %61 = vector.broadcast %60 : vector<1x1x128xi1> to vector<1x8x128xi1>
    %62 = vector.shape_cast %59 : vector<8x1xf32> to vector<1x8x1xf32>
    %63 = vector.broadcast %62 : vector<1x8x1xf32> to vector<1x8x128xf32>
    %64 = vector.broadcast %cst_9 : f32 to vector<1x8x128xf32>
    %65 = arith.select %61, %63, %64 : vector<1x8x128xi1>, vector<1x8x128xf32>
    %66 = arith.addf %55, %65 : vector<1x8x128xf32>
    %c6_i32 = arith.constant 6 : i32
    %67 = vector.broadcast %c6_i32 : i32 to vector<1x1x128xi32>
    %68 = arith.cmpi eq, %0, %67 : vector<1x1x128xi32>
    %69 = vector.extract_strided_slice %1 {offsets = [6, 0, 0], sizes = [1, 8, 1], strides = [1, 1, 1]} : vector<17x8x1xf32> to vector<1x8x1xf32>
    %70 = vector.shape_cast %69 : vector<1x8x1xf32> to vector<8x1xf32>
    %cst_10 = arith.constant 0.000000e+00 : f32
    %71 = vector.shape_cast %68 : vector<1x1x128xi1> to vector<1x1x128xi1>
    %72 = vector.broadcast %71 : vector<1x1x128xi1> to vector<1x8x128xi1>
    %73 = vector.shape_cast %70 : vector<8x1xf32> to vector<1x8x1xf32>
    %74 = vector.broadcast %73 : vector<1x8x1xf32> to vector<1x8x128xf32>
    %75 = vector.broadcast %cst_10 : f32 to vector<1x8x128xf32>
    %76 = arith.select %72, %74, %75 : vector<1x8x128xi1>, vector<1x8x128xf32>
    %77 = arith.addf %66, %76 : vector<1x8x128xf32>
    %c7_i32 = arith.constant 7 : i32
    %78 = vector.broadcast %c7_i32 : i32 to vector<1x1x128xi32>
    %79 = arith.cmpi eq, %0, %78 : vector<1x1x128xi32>
    %80 = vector.extract_strided_slice %1 {offsets = [7, 0, 0], sizes = [1, 8, 1], strides = [1, 1, 1]} : vector<17x8x1xf32> to vector<1x8x1xf32>
    %81 = vector.shape_cast %80 : vector<1x8x1xf32> to vector<8x1xf32>
    %cst_11 = arith.constant 0.000000e+00 : f32
    %82 = vector.shape_cast %79 : vector<1x1x128xi1> to vector<1x1x128xi1>
    %83 = vector.broadcast %82 : vector<1x1x128xi1> to vector<1x8x128xi1>
    %84 = vector.shape_cast %81 : vector<8x1xf32> to vector<1x8x1xf32>
    %85 = vector.broadcast %84 : vector<1x8x1xf32> to vector<1x8x128xf32>
    %86 = vector.broadcast %cst_11 : f32 to vector<1x8x128xf32>
    %87 = arith.select %83, %85, %86 : vector<1x8x128xi1>, vector<1x8x128xf32>
    %88 = arith.addf %77, %87 : vector<1x8x128xf32>
    %c8_i32 = arith.constant 8 : i32
    %89 = vector.broadcast %c8_i32 : i32 to vector<1x1x128xi32>
    %90 = arith.cmpi eq, %0, %89 : vector<1x1x128xi32>
    %91 = vector.extract_strided_slice %1 {offsets = [8, 0, 0], sizes = [1, 8, 1], strides = [1, 1, 1]} : vector<17x8x1xf32> to vector<1x8x1xf32>
    %92 = vector.shape_cast %91 : vector<1x8x1xf32> to vector<8x1xf32>
    %cst_12 = arith.constant 0.000000e+00 : f32
    %93 = vector.shape_cast %90 : vector<1x1x128xi1> to vector<1x1x128xi1>
    %94 = vector.broadcast %93 : vector<1x1x128xi1> to vector<1x8x128xi1>
    %95 = vector.shape_cast %92 : vector<8x1xf32> to vector<1x8x1xf32>
    %96 = vector.broadcast %95 : vector<1x8x1xf32> to vector<1x8x128xf32>
    %97 = vector.broadcast %cst_12 : f32 to vector<1x8x128xf32>
    %98 = arith.select %94, %96, %97 : vector<1x8x128xi1>, vector<1x8x128xf32>
    %99 = arith.addf %88, %98 : vector<1x8x128xf32>
    %c9_i32 = arith.constant 9 : i32
    %100 = vector.broadcast %c9_i32 : i32 to vector<1x1x128xi32>
    %101 = arith.cmpi eq, %0, %100 : vector<1x1x128xi32>
    %102 = vector.extract_strided_slice %1 {offsets = [9, 0, 0], sizes = [1, 8, 1], strides = [1, 1, 1]} : vector<17x8x1xf32> to vector<1x8x1xf32>
    %103 = vector.shape_cast %102 : vector<1x8x1xf32> to vector<8x1xf32>
    %cst_13 = arith.constant 0.000000e+00 : f32
    %104 = vector.shape_cast %101 : vector<1x1x128xi1> to vector<1x1x128xi1>
    %105 = vector.broadcast %104 : vector<1x1x128xi1> to vector<1x8x128xi1>
    %106 = vector.shape_cast %103 : vector<8x1xf32> to vector<1x8x1xf32>
    %107 = vector.broadcast %106 : vector<1x8x1xf32> to vector<1x8x128xf32>
    %108 = vector.broadcast %cst_13 : f32 to vector<1x8x128xf32>
    %109 = arith.select %105, %107, %108 : vector<1x8x128xi1>, vector<1x8x128xf32>
    %110 = arith.addf %99, %109 : vector<1x8x128xf32>
    %c10_i32 = arith.constant 10 : i32
    %111 = vector.broadcast %c10_i32 : i32 to vector<1x1x128xi32>
    %112 = arith.cmpi eq, %0, %111 : vector<1x1x128xi32>
    %113 = vector.extract_strided_slice %1 {offsets = [10, 0, 0], sizes = [1, 8, 1], strides = [1, 1, 1]} : vector<17x8x1xf32> to vector<1x8x1xf32>
    %114 = vector.shape_cast %113 : vector<1x8x1xf32> to vector<8x1xf32>
    %cst_14 = arith.constant 0.000000e+00 : f32
    %115 = vector.shape_cast %112 : vector<1x1x128xi1> to vector<1x1x128xi1>
    %116 = vector.broadcast %115 : vector<1x1x128xi1> to vector<1x8x128xi1>
    %117 = vector.shape_cast %114 : vector<8x1xf32> to vector<1x8x1xf32>
    %118 = vector.broadcast %117 : vector<1x8x1xf32> to vector<1x8x128xf32>
    %119 = vector.broadcast %cst_14 : f32 to vector<1x8x128xf32>
    %120 = arith.select %116, %118, %119 : vector<1x8x128xi1>, vector<1x8x128xf32>
    %121 = arith.addf %110, %120 : vector<1x8x128xf32>
    %c11_i32 = arith.constant 11 : i32
    %122 = vector.broadcast %c11_i32 : i32 to vector<1x1x128xi32>
    %123 = arith.cmpi eq, %0, %122 : vector<1x1x128xi32>
    %124 = vector.extract_strided_slice %1 {offsets = [11, 0, 0], sizes = [1, 8, 1], strides = [1, 1, 1]} : vector<17x8x1xf32> to vector<1x8x1xf32>
    %125 = vector.shape_cast %124 : vector<1x8x1xf32> to vector<8x1xf32>
    %cst_15 = arith.constant 0.000000e+00 : f32
    %126 = vector.shape_cast %123 : vector<1x1x128xi1> to vector<1x1x128xi1>
    %127 = vector.broadcast %126 : vector<1x1x128xi1> to vector<1x8x128xi1>
    %128 = vector.shape_cast %125 : vector<8x1xf32> to vector<1x8x1xf32>
    %129 = vector.broadcast %128 : vector<1x8x1xf32> to vector<1x8x128xf32>
    %130 = vector.broadcast %cst_15 : f32 to vector<1x8x128xf32>
    %131 = arith.select %127, %129, %130 : vector<1x8x128xi1>, vector<1x8x128xf32>
    %132 = arith.addf %121, %131 : vector<1x8x128xf32>
    %c12_i32 = arith.constant 12 : i32
    %133 = vector.broadcast %c12_i32 : i32 to vector<1x1x128xi32>
    %134 = arith.cmpi eq, %0, %133 : vector<1x1x128xi32>
    %135 = vector.extract_strided_slice %1 {offsets = [12, 0, 0], sizes = [1, 8, 1], strides = [1, 1, 1]} : vector<17x8x1xf32> to vector<1x8x1xf32>
    %136 = vector.shape_cast %135 : vector<1x8x1xf32> to vector<8x1xf32>
    %cst_16 = arith.constant 0.000000e+00 : f32
    %137 = vector.shape_cast %134 : vector<1x1x128xi1> to vector<1x1x128xi1>
    %138 = vector.broadcast %137 : vector<1x1x128xi1> to vector<1x8x128xi1>
    %139 = vector.shape_cast %136 : vector<8x1xf32> to vector<1x8x1xf32>
    %140 = vector.broadcast %139 : vector<1x8x1xf32> to vector<1x8x128xf32>
    %141 = vector.broadcast %cst_16 : f32 to vector<1x8x128xf32>
    %142 = arith.select %138, %140, %141 : vector<1x8x128xi1>, vector<1x8x128xf32>
    %143 = arith.addf %132, %142 : vector<1x8x128xf32>
    %c13_i32 = arith.constant 13 : i32
    %144 = vector.broadcast %c13_i32 : i32 to vector<1x1x128xi32>
    %145 = arith.cmpi eq, %0, %144 : vector<1x1x128xi32>
    %146 = vector.extract_strided_slice %1 {offsets = [13, 0, 0], sizes = [1, 8, 1], strides = [1, 1, 1]} : vector<17x8x1xf32> to vector<1x8x1xf32>
    %147 = vector.shape_cast %146 : vector<1x8x1xf32> to vector<8x1xf32>
    %cst_17 = arith.constant 0.000000e+00 : f32
    %148 = vector.shape_cast %145 : vector<1x1x128xi1> to vector<1x1x128xi1>
    %149 = vector.broadcast %148 : vector<1x1x128xi1> to vector<1x8x128xi1>
    %150 = vector.shape_cast %147 : vector<8x1xf32> to vector<1x8x1xf32>
    %151 = vector.broadcast %150 : vector<1x8x1xf32> to vector<1x8x128xf32>
    %152 = vector.broadcast %cst_17 : f32 to vector<1x8x128xf32>
    %153 = arith.select %149, %151, %152 : vector<1x8x128xi1>, vector<1x8x128xf32>
    %154 = arith.addf %143, %153 : vector<1x8x128xf32>
    %c14_i32 = arith.constant 14 : i32
    %155 = vector.broadcast %c14_i32 : i32 to vector<1x1x128xi32>
    %156 = arith.cmpi eq, %0, %155 : vector<1x1x128xi32>
    %157 = vector.extract_strided_slice %1 {offsets = [14, 0, 0], sizes = [1, 8, 1], strides = [1, 1, 1]} : vector<17x8x1xf32> to vector<1x8x1xf32>
    %158 = vector.shape_cast %157 : vector<1x8x1xf32> to vector<8x1xf32>
    %cst_18 = arith.constant 0.000000e+00 : f32
    %159 = vector.shape_cast %156 : vector<1x1x128xi1> to vector<1x1x128xi1>
    %160 = vector.broadcast %159 : vector<1x1x128xi1> to vector<1x8x128xi1>
    %161 = vector.shape_cast %158 : vector<8x1xf32> to vector<1x8x1xf32>
    %162 = vector.broadcast %161 : vector<1x8x1xf32> to vector<1x8x128xf32>
    %163 = vector.broadcast %cst_18 : f32 to vector<1x8x128xf32>
    %164 = arith.select %160, %162, %163 : vector<1x8x128xi1>, vector<1x8x128xf32>
    %165 = arith.addf %154, %164 : vector<1x8x128xf32>
    %c15_i32 = arith.constant 15 : i32
    %166 = vector.broadcast %c15_i32 : i32 to vector<1x1x128xi32>
    %167 = arith.cmpi eq, %0, %166 : vector<1x1x128xi32>
    %168 = vector.extract_strided_slice %1 {offsets = [15, 0, 0], sizes = [1, 8, 1], strides = [1, 1, 1]} : vector<17x8x1xf32> to vector<1x8x1xf32>
    %169 = vector.shape_cast %168 : vector<1x8x1xf32> to vector<8x1xf32>
    %cst_19 = arith.constant 0.000000e+00 : f32
    %170 = vector.shape_cast %167 : vector<1x1x128xi1> to vector<1x1x128xi1>
    %171 = vector.broadcast %170 : vector<1x1x128xi1> to vector<1x8x128xi1>
    %172 = vector.shape_cast %169 : vector<8x1xf32> to vector<1x8x1xf32>
    %173 = vector.broadcast %172 : vector<1x8x1xf32> to vector<1x8x128xf32>
    %174 = vector.broadcast %cst_19 : f32 to vector<1x8x128xf32>
    %175 = arith.select %171, %173, %174 : vector<1x8x128xi1>, vector<1x8x128xf32>
    %176 = arith.addf %165, %175 : vector<1x8x128xf32>
    %c16_i32 = arith.constant 16 : i32
    %177 = vector.broadcast %c16_i32 : i32 to vector<1x1x128xi32>
    %178 = arith.cmpi eq, %0, %177 : vector<1x1x128xi32>
    %179 = vector.extract_strided_slice %1 {offsets = [16, 0, 0], sizes = [1, 8, 1], strides = [1, 1, 1]} : vector<17x8x1xf32> to vector<1x8x1xf32>
    %180 = vector.shape_cast %179 : vector<1x8x1xf32> to vector<8x1xf32>
    %cst_20 = arith.constant 0.000000e+00 : f32
    %181 = vector.shape_cast %178 : vector<1x1x128xi1> to vector<1x1x128xi1>
    %182 = vector.broadcast %181 : vector<1x1x128xi1> to vector<1x8x128xi1>
    %183 = vector.shape_cast %180 : vector<8x1xf32> to vector<1x8x1xf32>
    %184 = vector.broadcast %183 : vector<1x8x1xf32> to vector<1x8x128xf32>
    %185 = vector.broadcast %cst_20 : f32 to vector<1x8x128xf32>
    %186 = arith.select %182, %184, %185 : vector<1x8x128xi1>, vector<1x8x128xf32>
    %187 = arith.addf %176, %186 : vector<1x8x128xf32>
    %c0_21 = arith.constant 0 : index
    %c0_22 = arith.constant 0 : index
    %c0_23 = arith.constant 0 : index
    %188 = vector.load %arg2[%c0_21, %c0_22, %c0_23] : memref<1x1x128xf32, #tpu.memory_space<vmem>>, vector<1x1x128xf32>
    %cst_24 = arith.constant 2.000000e+00 : f32
    %189 = vector.broadcast %cst_24 : f32 to vector<1x1x128xf32>
    %190 = arith.mulf %189, %188 : vector<1x1x128xf32>
    %191 = vector.broadcast %190 : vector<1x1x128xf32> to vector<1x8x128xf32>
    %192 = arith.addf %191, %187 : vector<1x8x128xf32>
    %c0_25 = arith.constant 0 : index
    %c0_26 = arith.constant 0 : index
    %c0_27 = arith.constant 0 : index
    %193 = vector.load %arg5[%c0_25, %c0_26, %c0_27] : memref<1x8x128xf32, #tpu.memory_space<vmem>>, vector<1x8x128xf32>
    tpu.vector_store %arg5[%c0_25, %c0_26, %c0_27], %192 {strides = array<i32>} : memref<1x8x128xf32, #tpu.memory_space<vmem>>, vector<1x8x128xf32>,
    return
  }
  func.func @transform_0(%arg0: i32, %arg1: i32) -> (i32, i32, i32) {
    %c0_i32 = arith.constant 0 : i32
    %c0_i32_0 = arith.constant 0 : i32
    return %arg0, %c0_i32, %arg1 : i32, i32, i32
  }
  func.func @transform_1(%arg0: i32, %arg1: i32) -> (i32, i32, i32) {
    %c0_i32 = arith.constant 0 : i32
    %c0_i32_0 = arith.constant 0 : i32
    return %arg0, %c0_i32, %arg1 : i32, i32, i32
  }
  func.func @transform_2(%arg0: i32, %arg1: i32) -> (i32, i32, i32) {
    %c0_i32 = arith.constant 0 : i32
    %c0_i32_0 = arith.constant 0 : i32
    %c0_i32_1 = arith.constant 0 : i32
    %c0_i32_2 = arith.constant 0 : i32
    return %c0_i32, %c0_i32_0, %c0_i32_1 : i32, i32, i32
  }
  func.func @transform_3(%arg0: i32, %arg1: i32) -> (i32, i32, i32) {
    %c0_i32 = arith.constant 0 : i32
    %c0_i32_0 = arith.constant 0 : i32
    return %arg0, %c0_i32, %arg1 : i32, i32, i32
  }
}

</mosaic_0001>

<llo_original>
// kernel: tpu_custom_call.1
$region0: #{tpu_custom_call.1}
  #allocation0 [shape = 'u32[]', space=smem, size = 0x4, offset = 0x4, fixed_abs, tag = 'smem constant byte address 0x4 - core index']
  #allocation1 [shape = 'u32[72,128]{1,0:T(1,128)}', space=vmem, size = 0x9000, scoped, tag = 'internal scratch']
  %s0 = inlined_call_operand.vmem [shape: f32[2,1,128], index: 0, kind: input, shape index: {}]
  %s1 = inlined_call_operand.vmem [shape: s32[2,1,128], index: 1, kind: input, shape index: {}]
  %s2 = inlined_call_operand.vmem [shape: f32[17,8,1], index: 2, kind: input, shape index: {}]
  %s3 = inlined_call_operand.hbm [shape: f32[2,8,128], index: 3, kind: output, shape index: {}]
  %s4 = sld [smem:[#allocation0]]
  $region45: #{tpu_custom_call.1} parent=0
    _
  %s6 = ssub.s32 1, %s4
  %s7 = scalar_select 0, %s6, %s4
  $region1: #{tpu_custom_call.1} parent=0
    #allocation2 [shape = 'u8[8192]{0}', space=vmem, size = 0x2000, scoped, tag = 'output window, operand 0']
    #allocation3 [shape = 's32[2]{0}', space=sflag, size = 0x8, scoped, tag = 'scoped memory for tpu_custom_call.1']
    %8 = vsyncpa [#allocation3], 0
    %s9 = scalar_lea.sflag [#allocation3], 1
    %10 = vsyncpa %s9, 0
    loop: start=0, step=1, limit=4
    $region2: #{tpu_custom_call.1} parent=1 // loop_pre_header
      _
    $region3: #{tpu_custom_call.1} parent=1 // loop_header
      %s12 = sphi 0, %s16
      %p13 = scmp.ge.s32.totalorder %s12, 4
      %s19 = sphi 0, %s31
      %s20 = sphi 0, %s27
      %s21 = sphi 0, %s19
      %s22 = sphi 0, %s20
      %s23 = sphi 0, %s21
      %s24 = sphi 0, %s22
      %s36 = sphi 0, %s38
      %s39 = sphi 0, %s36
      %s40 = sphi 0, %s39
      %s56 = sphi 0, %s40
      %s64 = sphi 0, %s66
      %s67 = sphi 0, %s64
      %s68 = sphi 0, %s67
      %s84 = sphi 0, %s68
      %s88 = sphi 0, %s88
      %s90 = sphi 0, %s88
      %s91 = sphi 0, %s90
      %s105 = sphi 0, %s91
      %s113 = sphi 0, %s115
      %s116 = sphi 0, %s113
      %s117 = sphi 0, %s116
      %s133 = sphi 0, %s117
    $region4: #{tpu_custom_call.1} parent=1 // loop_header_branch
      %15 = sbr.rel (%p13) target = $region8
    $region5: #{tpu_custom_call.1} parent=1 // loop_body
      %s17 = ssub.s32 %s12, 1
      %s18 = ssub.s32 %s12, 2
      %s25 = sadd.s32 1, %s20
      %p26 = scmp.ge.s32.totalorder %s25, 1
      %s27 = scalar_select %p26, 0, %s25
      %s28 = sadd.s32 1, %s19
      %s29 = scalar_select %p26, %s28, %s19
      %p30 = scmp.ge.s32.totalorder %s29, 2
      %s31 = scalar_select %p30, 0, %s29
      %s32 = ssub.s32 %s19, %s31
      %s33 = ssub.s32 %s20, %s27
      %s34 = sor.u32 %s32, %s33
      %p35 = scmp.eq.s32.totalorder %s34, 0
      %s37 = sadd.s32 %s36, 1
      %s38 = scalar_select %p35, %s36, %s37
      %p41 = pneg %p35
      %p42 = scmp.eq.s32.totalorder %s12, 1
      %p43 = por %p41, %p42
      %p44 = scmp.ne.s32.totalorder %s36, %s39
      %p45 = scmp.eq.s32.totalorder %s12, 0
      %p46 = por %p44, %p45
      %p47 = scmp.ne.s32.totalorder %s36, %s39
      %p48 = scmp.eq.s32.totalorder %s17, 1
      %p49 = por %p47, %p48
      %p50 = scmp.ne.s32.totalorder %s39, %s40
      %p51 = scmp.eq.s32.totalorder %s17, 0
      %p52 = por %p50, %p51
      %p53 = scmp.ne.s32.totalorder %s39, %s40
      %p54 = scmp.eq.s32.totalorder %s18, 1
      %p55 = por %p53, %p54
      %p57 = scmp.ne.s32.totalorder %s40, %s56
      %p58 = scmp.eq.s32.totalorder %s18, 0
      %p59 = por %p57, %p58
      %s60 = ssub.s32 %s19, %s31
      %s61 = ssub.s32 %s20, %s27
      %s62 = sor.u32 %s60, %s61
      %p63 = scmp.eq.s32.totalorder %s62, 0
      %s65 = sadd.s32 %s64, 1
      %s66 = scalar_select %p63, %s64, %s65
      %p69 = pneg %p63
      %p70 = scmp.eq.s32.totalorder %s12, 1
      %p71 = por %p69, %p70
      %p72 = scmp.ne.s32.totalorder %s64, %s67
      %p73 = scmp.eq.s32.totalorder %s12, 0
      %p74 = por %p72, %p73
      %p75 = scmp.ne.s32.totalorder %s64, %s67
      %p76 = scmp.eq.s32.totalorder %s17, 1
      %p77 = por %p75, %p76
      %p78 = scmp.ne.s32.totalorder %s67, %s68
      %p79 = scmp.eq.s32.totalorder %s17, 0
      %p80 = por %p78, %p79
      %p81 = scmp.ne.s32.totalorder %s67, %s68
      %p82 = scmp.eq.s32.totalorder %s18, 1
      %p83 = por %p81, %p82
      %p85 = scmp.ne.s32.totalorder %s68, %s84
      %p86 = scmp.eq.s32.totalorder %s18, 0
      %p87 = por %p85, %p86
      %s89 = sadd.s32 %s88, 1
      %p92 = scmp.eq.s32.totalorder %s12, 1
      %p93 = scmp.ne.s32.totalorder %s88, %s90
      %p94 = scmp.eq.s32.totalorder %s12, 0
      %p95 = por %p93, %p94
      %p96 = scmp.ne.s32.totalorder %s88, %s90
      %p97 = scmp.eq.s32.totalorder %s17, 1
      %p98 = por %p96, %p97
      %p99 = scmp.ne.s32.totalorder %s90, %s91
      %p100 = scmp.eq.s32.totalorder %s17, 0
      %p101 = por %p99, %p100
      %p102 = scmp.ne.s32.totalorder %s90, %s91
      %p103 = scmp.eq.s32.totalorder %s18, 1
      %p104 = por %p102, %p103
      %p106 = scmp.ne.s32.totalorder %s91, %s105
      %p107 = scmp.eq.s32.totalorder %s18, 0
      %p108 = por %p106, %p107
      %s109 = ssub.s32 %s19, %s31
      %s110 = ssub.s32 %s20, %s27
      %s111 = sor.u32 %s109, %s110
      %p112 = scmp.eq.s32.totalorder %s111, 0
      %s114 = sadd.s32 %s113, 1
      %s115 = scalar_select %p112, %s113, %s114
      %p118 = pneg %p112
      %p119 = scmp.eq.s32.totalorder %s12, 1
      %p120 = por %p118, %p119
      %p121 = scmp.ne.s32.totalorder %s113, %s116
      %p122 = scmp.eq.s32.totalorder %s12, 0
      %p123 = por %p121, %p122
      %p124 = scmp.ne.s32.totalorder %s113, %s116
      %p125 = scmp.eq.s32.totalorder %s17, 1
      %p126 = por %p124, %p125
      %p127 = scmp.ne.s32.totalorder %s116, %s117
      %p128 = scmp.eq.s32.totalorder %s17, 0
      %p129 = por %p127, %p128
      %p130 = scmp.ne.s32.totalorder %s116, %s117
      %p131 = scmp.eq.s32.totalorder %s18, 1
      %p132 = por %p130, %p131
      %p134 = scmp.ne.s32.totalorder %s117, %s133
      %p135 = scmp.eq.s32.totalorder %s18, 0
      %p136 = por %p134, %p135
      %p137 = scmp.le.s32.totalorder 1, %s12
      %p138 = scmp.lt.s32.totalorder %s12, 3
      %p139 = pnand %p137, %p138
      %p140 = pneg %p139
      // Predicated region
      $region9: #{tpu_custom_call.1} parent=5 // pred_check
        _
      $region10: #{tpu_custom_call.1} parent=5 // pred_check_branch
        %142 = sbr.rel (%p139) target = $region12
      $region11: #{tpu_custom_call.1} parent=5 // pred_region
        %s143 = ssub.s32 %s12, 1
        // Predicated region
        $region13: #{tpu_custom_call.1} parent=11 // pred_check
          %p144 = pneg %p101
        $region14: #{tpu_custom_call.1} parent=11 // pred_check_branch
          %146 = sbr.rel (%p144) target = $region16
        $region15: #{tpu_custom_call.1} parent=11 // pred_region
          _
        $region16: #{tpu_custom_call.1} parent=11 // pred_fallthru
          _
      $region12: #{tpu_custom_call.1} parent=5 // pred_fallthru
        _
      %p147 = scmp.lt.s32.totalorder %s12, 2
      // Predicated region
      $region17: #{tpu_custom_call.1} parent=5 // pred_check
        %p148 = pneg %p147
      $region18: #{tpu_custom_call.1} parent=5 // pred_check_branch
        %150 = sbr.rel (%p148) target = $region20
      $region19: #{tpu_custom_call.1} parent=5 // pred_region
        // Predicated region
        $region21: #{tpu_custom_call.1} parent=19 // pred_check
          %p151 = pneg %p46
        $region22: #{tpu_custom_call.1} parent=19 // pred_check_branch
          %153 = sbr.rel (%p151) target = $region24
        $region23: #{tpu_custom_call.1} parent=19 // pred_region
          %p154 = scmp.lt.s32.totalorder %s19, 1
          %s155 = scalar_select %p154, %s19, 1
          %p156 = scmp.lt.s32.totalorder %s20, 0
          %s157 = scalar_select %p156, %s20, 0
          %s158 = sadd.s32 %s157, %s155
          %s159 = scalar_lea.vmem %s0, %s158
        $region24: #{tpu_custom_call.1} parent=19 // pred_fallthru
          _
        // Predicated region
        $region25: #{tpu_custom_call.1} parent=19 // pred_check
          %p160 = pneg %p74
        $region26: #{tpu_custom_call.1} parent=19 // pred_check_branch
          %162 = sbr.rel (%p160) target = $region28
        $region27: #{tpu_custom_call.1} parent=19 // pred_region
          %p163 = scmp.lt.s32.totalorder %s19, 1
          %s164 = scalar_select %p163, %s19, 1
          %p165 = scmp.lt.s32.totalorder %s20, 0
          %s166 = scalar_select %p165, %s20, 0
          %s167 = sadd.s32 %s166, %s164
          %s168 = scalar_lea.vmem %s1, %s167
        $region28: #{tpu_custom_call.1} parent=19 // pred_fallthru
          _
      $region20: #{tpu_custom_call.1} parent=5 // pred_fallthru
        _
      %p169 = scmp.le.s32.totalorder 1, %s12
      %p170 = scmp.lt.s32.totalorder %s12, 3
      %p171 = pnand %p169, %p170
      %p172 = pneg %p171
      // Predicated region
      $region29: #{tpu_custom_call.1} parent=5 // pred_check
        _
      $region30: #{tpu_custom_call.1} parent=5 // pred_check_branch
        %174 = sbr.rel (%p171) target = $region32
      $region31: #{tpu_custom_call.1} parent=5 // pred_region
        %s175 = ssub.s32 %s12, 1
        %p176 = scmp.lt.s32.totalorder %s21, 1
        %s177 = scalar_select %p176, %s21, 1
        %p178 = scmp.lt.s32.totalorder %s22, 0
        %s179 = scalar_select %p178, %s22, 0
        %s180 = sadd.s32 %s179, %s177
        %s181 = scalar_lea.vmem %s0, %s180
        %p182 = pneg %p52
        %p183 = pneg %p49
        %p184 = scmp.lt.s32.totalorder %s21, 1
        %s185 = scalar_select %p184, %s21, 1
        %p186 = scmp.lt.s32.totalorder %s22, 0
        %s187 = scalar_select %p186, %s22, 0
        %s188 = sadd.s32 %s187, %s185
        %s189 = scalar_lea.vmem %s1, %s188
        %p190 = pneg %p80
        %p191 = pneg %p77
        %p192 = pneg %p101
        %p193 = pneg %p98
        %p194 = pneg %p129
        %p195 = pneg %p126
        %s196 = sand.u32 %s116, 1
        %s197 = scalar_lea.sflag [#allocation3], %s196
        %s198 = sand.u32 %s116, 1
        %s199 = smul.addr %s198, 8
        %s200 = scalar_lea.vmem [#allocation2], %s199
        %p201 = scmp.lt.s32.totalorder %s21, 1
        %s202 = scalar_select %p201, %s21, 1
        %p203 = scmp.lt.s32.totalorder %s22, 0
        %s204 = scalar_select %p203, %s22, 0
        %s205 = sadd.s32 %s204, %s202
        %s206 = scalar_lea.vmem %s0, %s205
        %p207 = scmp.lt.s32.totalorder %s21, 1
        %s208 = scalar_select %p207, %s21, 1
        %p209 = scmp.lt.s32.totalorder %s22, 0
        %s210 = scalar_select %p209, %s22, 0
        %s211 = sadd.s32 %s210, %s208
        %s212 = scalar_lea.vmem %s1, %s211
        %v213 = vld [vmem:[%s212] sm:$0x1]
        %v214 = vld [vmem:[%s2] sm:$0xff]
        %v215 = vld [vmem:[%s2 + $0x8] sm:$0xff]
        %v216 = vld [vmem:[%s2 + $0x10] sm:$0xff]
        %v217 = vld [vmem:[%s2 + $0x18] sm:$0xff]
        %v218 = vld [vmem:[%s2 + $0x20] sm:$0xff]
        %v219 = vld [vmem:[%s2 + $0x28] sm:$0xff]
        %v220 = vld [vmem:[%s2 + $0x30] sm:$0xff]
        %v221 = vld [vmem:[%s2 + $0x38] sm:$0xff]
        %v222 = vld [vmem:[%s2 + $0x40] sm:$0xff]
        %v223 = vld [vmem:[%s2 + $0x48] sm:$0xff]
        %v224 = vld [vmem:[%s2 + $0x50] sm:$0xff]
        %v225 = vld [vmem:[%s2 + $0x58] sm:$0xff]
        %v226 = vld [vmem:[%s2 + $0x60] sm:$0xff]
        %v227 = vld [vmem:[%s2 + $0x68] sm:$0xff]
        %v228 = vld [vmem:[%s2 + $0x70] sm:$0xff]
        %v229 = vld [vmem:[%s2 + $0x78] sm:$0xff]
        %v230 = vld [vmem:[%s2 + $0x80] sm:$0xff]
        %vm231 = vcmp.eq.s32.totalorder %v213, 0
        %v232 = vsel %vm231, 1, 0
        %v233 = vperm.slane %v232, 0
        %vm234 = vcmp.eq.s32.totalorder %v233, 1
        %236 = vset.pattern.permute.xlu0 0
        %237 = vperm.xlu0 %236, %v214
        %v238 = vpop.permute.xlu0 %237
        %v240 = vsel %vm234, %v238, 0.0
        %vm241 = vcmp.eq.s32.totalorder %v213, 1
        %v242 = vsel %vm241, 1, 0
        %v243 = vperm.slane %v242, 0
        %vm244 = vcmp.eq.s32.totalorder %v243, 1
        %246 = vset.pattern.permute.xlu0 0
        %247 = vperm.xlu0 %246, %v215
        %v248 = vpop.permute.xlu0 %247
        %v250 = vsel %vm244, %v248, 0.0
        %v251 = vadd.f32 %v240, %v250
        %vm252 = vcmp.eq.s32.totalorder %v213, 2
        %v253 = vsel %vm252, 1, 0
        %v254 = vperm.slane %v253, 0
        %vm255 = vcmp.eq.s32.totalorder %v254, 1
        %257 = vset.pattern.permute.xlu0 0
        %258 = vperm.xlu0 %257, %v216
        %v259 = vpop.permute.xlu0 %258
        %v261 = vsel %vm255, %v259, 0.0
        %v262 = vadd.f32 %v251, %v261
        %vm263 = vcmp.eq.s32.totalorder %v213, 3
        %v264 = vsel %vm263, 1, 0
        %v265 = vperm.slane %v264, 0
        %vm266 = vcmp.eq.s32.totalorder %v265, 1
        %268 = vset.pattern.permute.xlu0 0
        %269 = vperm.xlu0 %268, %v217
        %v270 = vpop.permute.xlu0 %269
        %v272 = vsel %vm266, %v270, 0.0
        %v273 = vadd.f32 %v262, %v272
        %vm274 = vcmp.eq.s32.totalorder %v213, 4
        %v275 = vsel %vm274, 1, 0
        %v276 = vperm.slane %v275, 0
        %vm277 = vcmp.eq.s32.totalorder %v276, 1
        %279 = vset.pattern.permute.xlu0 0
        %280 = vperm.xlu0 %279, %v218
        %v281 = vpop.permute.xlu0 %280
        %v283 = vsel %vm277, %v281, 0.0
        %v284 = vadd.f32 %v273, %v283
        %vm285 = vcmp.eq.s32.totalorder %v213, 5
        %v286 = vsel %vm285, 1, 0
        %v287 = vperm.slane %v286, 0
        %vm288 = vcmp.eq.s32.totalorder %v287, 1
        %290 = vset.pattern.permute.xlu0 0
        %291 = vperm.xlu0 %290, %v219
        %v292 = vpop.permute.xlu0 %291
        %v294 = vsel %vm288, %v292, 0.0
        %v295 = vadd.f32 %v284, %v294
        %vm296 = vcmp.eq.s32.totalorder %v213, 6
        %v297 = vsel %vm296, 1, 0
        %v298 = vperm.slane %v297, 0
        %vm299 = vcmp.eq.s32.totalorder %v298, 1
        %301 = vset.pattern.permute.xlu0 0
        %302 = vperm.xlu0 %301, %v220
        %v303 = vpop.permute.xlu0 %302
        %v305 = vsel %vm299, %v303, 0.0
        %v306 = vadd.f32 %v295, %v305
        %vm307 = vcmp.eq.s32.totalorder %v213, 7
        %v308 = vsel %vm307, 1, 0
        %v309 = vperm.slane %v308, 0
        %vm310 = vcmp.eq.s32.totalorder %v309, 1
        %312 = vset.pattern.permute.xlu0 0
        %313 = vperm.xlu0 %312, %v221
        %v314 = vpop.permute.xlu0 %313
        %v316 = vsel %vm310, %v314, 0.0
        %v317 = vadd.f32 %v306, %v316
        %vm318 = vcmp.eq.s32.totalorder %v213, 8
        %v319 = vsel %vm318, 1, 0
        %v320 = vperm.slane %v319, 0
        %vm321 = vcmp.eq.s32.totalorder %v320, 1
        %323 = vset.pattern.permute.xlu0 0
        %324 = vperm.xlu0 %323, %v222
        %v325 = vpop.permute.xlu0 %324
        %v327 = vsel %vm321, %v325, 0.0
        %v328 = vadd.f32 %v317, %v327
        %vm329 = vcmp.eq.s32.totalorder %v213, 9
        %v330 = vsel %vm329, 1, 0
        %v331 = vperm.slane %v330, 0
        %vm332 = vcmp.eq.s32.totalorder %v331, 1
        %334 = vset.pattern.permute.xlu0 0
        %335 = vperm.xlu0 %334, %v223
        %v336 = vpop.permute.xlu0 %335
        %v338 = vsel %vm332, %v336, 0.0
        %v339 = vadd.f32 %v328, %v338
        %vm340 = vcmp.eq.s32.totalorder %v213, 10
        %v341 = vsel %vm340, 1, 0
        %v342 = vperm.slane %v341, 0
        %vm343 = vcmp.eq.s32.totalorder %v342, 1
        %345 = vset.pattern.permute.xlu0 0
        %346 = vperm.xlu0 %345, %v224
        %v347 = vpop.permute.xlu0 %346
        %v349 = vsel %vm343, %v347, 0.0
        %v350 = vadd.f32 %v339, %v349
        %vm351 = vcmp.eq.s32.totalorder %v213, 11
        %v352 = vsel %vm351, 1, 0
        %v353 = vperm.slane %v352, 0
        %vm354 = vcmp.eq.s32.totalorder %v353, 1
        %356 = vset.pattern.permute.xlu0 0
        %357 = vperm.xlu0 %356, %v225
        %v358 = vpop.permute.xlu0 %357
        %v360 = vsel %vm354, %v358, 0.0
        %v361 = vadd.f32 %v350, %v360
        %vm362 = vcmp.eq.s32.totalorder %v213, 12
        %v363 = vsel %vm362, 1, 0
        %v364 = vperm.slane %v363, 0
        %vm365 = vcmp.eq.s32.totalorder %v364, 1
        %367 = vset.pattern.permute.xlu0 0
        %368 = vperm.xlu0 %367, %v226
        %v369 = vpop.permute.xlu0 %368
        %v371 = vsel %vm365, %v369, 0.0
        %v372 = vadd.f32 %v361, %v371
        %vm373 = vcmp.eq.s32.totalorder %v213, 13
        %v374 = vsel %vm373, 1, 0
        %v375 = vperm.slane %v374, 0
        %vm376 = vcmp.eq.s32.totalorder %v375, 1
        %378 = vset.pattern.permute.xlu0 0
        %379 = vperm.xlu0 %378, %v227
        %v380 = vpop.permute.xlu0 %379
        %v382 = vsel %vm376, %v380, 0.0
        %v383 = vadd.f32 %v372, %v382
        %vm384 = vcmp.eq.s32.totalorder %v213, 14
        %v385 = vsel %vm384, 1, 0
        %v386 = vperm.slane %v385, 0
        %vm387 = vcmp.eq.s32.totalorder %v386, 1
        %389 = vset.pattern.permute.xlu0 0
        %390 = vperm.xlu0 %389, %v228
        %v391 = vpop.permute.xlu0 %390
        %v393 = vsel %vm387, %v391, 0.0
        %v394 = vadd.f32 %v383, %v393
        %vm395 = vcmp.eq.s32.totalorder %v213, 15
        %v396 = vsel %vm395, 1, 0
        %v397 = vperm.slane %v396, 0
        %vm398 = vcmp.eq.s32.totalorder %v397, 1
        %400 = vset.pattern.permute.xlu0 0
        %401 = vperm.xlu0 %400, %v229
        %v402 = vpop.permute.xlu0 %401
        %v404 = vsel %vm398, %v402, 0.0
        %v405 = vadd.f32 %v394, %v404
        %vm406 = vcmp.eq.s32.totalorder %v213, 16
        %v407 = vsel %vm406, 1, 0
        %v408 = vperm.slane %v407, 0
        %vm409 = vcmp.eq.s32.totalorder %v408, 1
        %411 = vset.pattern.permute.xlu0 0
        %412 = vperm.xlu0 %411, %v230
        %v413 = vpop.permute.xlu0 %412
        %v415 = vsel %vm409, %v413, 0.0
        %v416 = vadd.f32 %v405, %v415
        %v417 = vld [vmem:[%s206] sm:$0x1]
        %v418 = vmul.f32 %v417, 2.0
        %v420 = vperm.slane %v418, 0
        %v422 = vadd.f32 %v420, %v416
        %423 = vst [vmem:[%s200] sm:$0xff] %v422
        %s424 = sand.u32 %s116, 1
        %s425 = scalar_lea.sflag [#allocation3], %s424
        %s426 = sand.u32 %s116, 1
        %s427 = smul.addr %s426, 8
        %s428 = scalar_lea.vmem [#allocation2], %s427
        // Predicated region
        $region33: #{tpu_custom_call.1} parent=31 // pred_check
          %p429 = pneg %p126
        $region34: #{tpu_custom_call.1} parent=31 // pred_check_branch
          %431 = sbr.rel (%p429) target = $region36
        $region35: #{tpu_custom_call.1} parent=31 // pred_region
          %433 = vsyncadd %s425, 0
          %s434 = sadd.s32 %s22, %s21
          %s435 = smul.addr %s434, 8
          %s436 = scalar_lea.hbm %s3, %s435
          %s438 = sshll.u32 %s428, 4
          %s439 = int_to_ptr.vmem [resolvable:$true] %s438
          %s440 = sshll.u32 %s436, 4
          %s441 = int_to_ptr.hbm [resolvable:$true] %s440
          %443 = dma.vmem_to_hbm [thread:$0]  %s439, 128, %s441, %s425
        $region36: #{tpu_custom_call.1} parent=31 // pred_fallthru
          _
      $region32: #{tpu_custom_call.1} parent=5 // pred_fallthru
        _
      %p444 = scmp.le.s32.totalorder 2, %s12
      // Predicated region
      $region37: #{tpu_custom_call.1} parent=5 // pred_check
        %p445 = pneg %p444
      $region38: #{tpu_custom_call.1} parent=5 // pred_check_branch
        %447 = sbr.rel (%p445) target = $region40
      $region39: #{tpu_custom_call.1} parent=5 // pred_region
        %s448 = ssub.s32 %s12, 2
        // Predicated region
        $region41: #{tpu_custom_call.1} parent=39 // pred_check
          %p449 = pneg %p132
        $region42: #{tpu_custom_call.1} parent=39 // pred_check_branch
          %451 = sbr.rel (%p449) target = $region44
        $region43: #{tpu_custom_call.1} parent=39 // pred_region
          %s452 = sand.u32 %s117, 1
          %s453 = scalar_lea.sflag [#allocation3], %s452
          %s454 = sand.u32 %s117, 1
          %s455 = smul.addr %s454, 8
          %s456 = scalar_lea.vmem [#allocation2], %s455
          %458 = dma.done %s453, 128
        $region44: #{tpu_custom_call.1} parent=39 // pred_fallthru
          _
      $region40: #{tpu_custom_call.1} parent=5 // pred_fallthru
        _
    $region6: #{tpu_custom_call.1} parent=1 // loop_footer
      %s16 = sadd.s32 1, %s12
    $region7: #{tpu_custom_call.1} parent=1 // loop_footer_branch
      %11 = sbr.rel target = $region3
    $region8: #{tpu_custom_call.1} parent=1 // loop_exit
      _
    %459 = vsyncpa [#allocation3], 1
    %s460 = scalar_lea.sflag [#allocation3], 1
    %461 = vsyncpa %s460, 1

</llo_original>
